<compile_context>
chip_gen: v6e
topology: v6e:2x2x1
jax: 0.10.0
libtpu: 0.0.40
codegen_flags: <defaults>
</compile_context>

<pallas_src>
from functools import partial

import jax
import jax.numpy as jnp
from jax import lax
from jax.experimental import pallas as pl
from jax.experimental.pallas import tpu as pltpu

_EPS = 1e-5  # PyTorch BatchNorm1d default


# ---------------------------------------------------------------------------
# in-kernel helpers
# ---------------------------------------------------------------------------
def _shift(x, d):
    """out[..., t] = x[..., t + d], zero outside [0, L) (== conv zero padding)."""
    if d == 0:
        return x
    L = x.shape[-1]
    if abs(d) >= L:
        return jnp.zeros_like(x)
    z = jnp.zeros(x.shape[:-1] + (abs(d),), x.dtype)
    if d > 0:
        return jnp.concatenate([x[..., d:], z], axis=-1)
    return jnp.concatenate([z, x[..., :L + d]], axis=-1)


def _stats(v):
    """Per-channel (sum, sum-of-squares) over batch and length. v: (bpt, C, L) f32."""
    s = jnp.sum(v, axis=0)                      # (C, L)
    q = jnp.sum(v * v, axis=0)                  # (C, L)
    return jnp.concatenate([jnp.sum(s, axis=1, keepdims=True),
                            jnp.sum(q, axis=1, keepdims=True)], axis=1)   # (C, 2)


def _tap_conv(x, w_taps, cdt):
    """Dense conv over channels: x (bpt, C, L), w_taps (K, O, C) -> (bpt, O, L) f32."""
    K = w_taps.shape[0]
    pad = K // 2
    bpt = x.shape[0]
    xc = x.astype(cdt)
    y = None
    for k in range(K):
        wb = jnp.broadcast_to(w_taps[k][None], (bpt,) + w_taps.shape[1:])
        t = jnp.einsum("bok,bkl->bol", wb, _shift(xc, k - pad),
                       preferred_element_type=jnp.float32)
        y = t if y is None else y + t
    return y


def _cheap_conv(x1, wd, *, Kd, m, Cc, cdt):
    """Grouped (groups=Cinit) conv of x1 (bpt, Ci, L) f32 -> (bpt, Cc, L) f32."""
    pad = Kd // 2
    if m == 1:                                   # pure depthwise: VPU per-channel taps
        z = jnp.zeros(x1.shape[:1] + (Cc, x1.shape[-1]), jnp.float32)
        for k in range(Kd):
            z = z + wd[:, k:k + 1][None] * _shift(x1, k - pad)
        return z
    return _tap_conv(x1, wd, cdt)                # group expanded to dense per-tap mats


def _bn1(x1r, sc1, relu):
    """Apply folded BN1 (scale/shift) + optional ReLU in f32."""
    x1 = x1r.astype(jnp.float32) * sc1[:, 0:1][None] + sc1[:, 1:2][None]
    return jnp.maximum(x1, 0.0) if relu else x1


# ---------------------------------------------------------------------------
# kernel factories
# ---------------------------------------------------------------------------
def _primary_kernel(cdt):
    def kernel(x_ref, wp_ref, x1r_ref, st_ref):
        y = _tap_conv(x_ref[...], wp_ref[...], cdt)            # (bpt, Ci, L) f32
        ys = y.astype(x1r_ref.dtype)                           # bf16 HBM intermediate
        x1r_ref[...] = ys
        # BN1 stats taken on the values that will actually be normalized later.
        st_ref[...] = _stats(ys.astype(jnp.float32))
    return kernel


def _stats2_kernel(*, Kd, m, Cc, relu, cdt):
    def kernel(x1r_ref, sc1_ref, wd_ref, st_ref):
        x1 = _bn1(x1r_ref[...], sc1_ref[...], relu)
        z = _cheap_conv(x1, wd_ref[...], Kd=Kd, m=m, Cc=Cc, cdt=cdt)
        st_ref[...] = _stats(z)                                # x2 never hits HBM
    return kernel


def _finish_kernel(*, Kd, m, Cc, n1, n2, c_final, relu, cdt):
    # NOTE: for realistic channel counts (multiples of 8) the row-range stores
    # below are sublane-aligned full stores; misalignment only occurs at toy
    # channel counts where the masked-store cost is negligible.
    if n2 > 0:
        def kernel(x1r_ref, sc1_ref, sc2_ref, wd_ref, out_ref):
            x1 = _bn1(x1r_ref[...], sc1_ref[...], relu)
            out_ref[:, 0:n1, :] = x1[:, 0:n1, :].astype(out_ref.dtype)
            z = _cheap_conv(x1, wd_ref[...], Kd=Kd, m=m, Cc=Cc, cdt=cdt)
            sc2 = sc2_ref[...]
            z = z * sc2[:, 0:1][None] + sc2[:, 1:2][None]
            if relu:
                z = jnp.maximum(z, 0.0)
            out_ref[:, n1:n1 + n2, :] = z[:, 0:n2, :].astype(out_ref.dtype)
            if c_final > n1 + n2:      # channel rows added by torch F.pad stay zero
                out_ref[:, n1 + n2:c_final, :] = jnp.zeros(
                    (x1.shape[0], c_final - n1 - n2, x1.shape[-1]), out_ref.dtype)
        return kernel

    def kernel(x1r_ref, sc1_ref, out_ref):
        x1 = _bn1(x1r_ref[...], sc1_ref[...], relu)
        out_ref[...] = x1[:, 0:n1, :].astype(out_ref.dtype)
    return kernel


# ---------------------------------------------------------------------------
# wrapper-side helpers
# ---------------------------------------------------------------------------
def _bn_affine(st, count, gamma, beta):
    """Fold biased batch statistics + affine params into per-channel (scale, shift)."""
    s = jnp.sum(st, axis=0)                               # reduce per-tile partials
    mean = s[:, 0] / count
    var = jnp.maximum(s[:, 1] / count - mean * mean, 0.0)
    scale = gamma.astype(jnp.float32) * lax.rsqrt(var + _EPS)
    return jnp.stack([scale, beta.astype(jnp.float32) - mean * scale], axis=1)


def _vmem_capacity():
    cap = 64 << 20                       # v7x per-TensorCore VMEM (smallest case)
    try:
        cap = int(getattr(pltpu.get_tpu_info(), "vmem_capacity_bytes", cap))
    except Exception:
        pass
    return cap


def _choose_bpt(B, per_batch_bytes, budget):
    """Largest divisor of B whose pipelined blocks fit `budget`; keep >= 2 grid
    steps whenever B >= 2 so the parallel grid axis can use both v7x cores
    (a no-op on single-core v5e/v6e since blocks stay MiB-class)."""
    max_bpt = max(1, budget // max(1, per_batch_bytes))
    if B >= 2:
        max_bpt = min(max_bpt, max(1, B // 2))
    bpt, d = 1, 1
    while d <= min(B, max_bpt):
        if B % d == 0:
            bpt = d
        d += 1
    return bpt


def ghost_module_forward(x, wp, wd, g1, b1, g2, b2, *, stride=1, relu=True):
    """GhostModule forward.  x: (B, Cin, L); wp: (Cinit, Cin, Kp); wd: (Ccheap, 1, Kd)."""
    B, Cin, L = x.shape
    Cinit, _, Kp = wp.shape
    Ccheap, _, Kd = wd.shape
    if stride != 1:
        raise NotImplementedError("stride != 1")  # TODO(synk): strided primary conv
    assert Kp % 2 == 1 and Kd % 2 == 1, "even kernel sizes change length in PyTorch"
    assert Ccheap >= 1 and Ccheap % Cinit == 0, "grouped conv needs cheap % init == 0"
    m = Ccheap // Cinit
    N = B * L

    c_total = Cinit + max(Ccheap, Cinit)          # after x2 channel padding
    c_final = min(Cin, c_total)                   # module slices cat(...) to Cin
    n1 = min(Cinit, c_final)                      # x1 rows in the output
    n2 = min(Ccheap, max(0, c_final - n1))        # x2 rows in the output

    f32 = jnp.float32
    cdt = jnp.bfloat16 if x.dtype == jnp.bfloat16 else f32   # MXU operand dtype
    sdt = jnp.bfloat16                                       # HBM intermediate dtype
    odt = x.dtype

    # ---- generation-aware tile sizing ------------------------------------
    cap = _vmem_capacity()
    budget = max(4 << 20, cap // 4)               # pipelined-block working set
    in_b, sd_b = jnp.dtype(x.dtype).itemsize, jnp.dtype(sdt).itemsize
    io_pb = 2 * L * (Cin * in_b + 2 * Cinit * sd_b + c_final * in_b)   # dbl-buffered
    tmp_pb = 4 * L * (Kp * Cin + (Kd + 3) * Cinit + 2 * Ccheap + c_final + 8)
    bpt = _choose_bpt(B, io_pb + tmp_pb, budget)
    nt = B // bpt
    # TODO(synk): a single sequence whose (C, L) slab alone exceeds the VMEM
    # budget would additionally need halo tiling along L.
    params = pltpu.CompilerParams(
        dimension_semantics=("parallel",),
        vmem_limit_bytes=int(max(32 << 20, min(cap // 2, 64 << 20))))

    # ---- trace-time weight preparation (tiny) -----------------------------
    wp_k = jnp.transpose(wp, (2, 0, 1)).astype(cdt)            # (Kp, Cinit, Cin)
    if m == 1:                                                 # depthwise taps (VPU)
        wd_k = wd[:, 0, :].astype(f32)                         # (Cc, Kd)
    else:                                                      # group -> dense taps
        cc = jnp.arange(Ccheap)
        wd_k = jnp.zeros((Kd, Ccheap, Cinit), f32).at[:, cc, cc // m].set(
            jnp.transpose(wd[:, 0, :].astype(f32))).astype(cdt)  # (Kd, Cc, Ci)

    tile3 = lambda i: (i, 0, 0)
    full = lambda a: pl.BlockSpec(a.shape, lambda i, _nd=a.ndim: (0,) * _nd)

    # ---- call 1: primary conv -> bf16 x1_raw + per-tile BN1 partials ------
    x1_raw, st1 = pl.pallas_call(
        _primary_kernel(cdt),
        grid=(nt,),
        in_specs=[pl.BlockSpec((bpt, Cin, L), tile3), full(wp_k)],
        out_specs=[pl.BlockSpec((bpt, Cinit, L), tile3),
                   pl.BlockSpec((None, Cinit, 2), tile3)],
        out_shape=[jax.ShapeDtypeStruct((B, Cinit, L), sdt),
                   jax.ShapeDtypeStruct((nt, Cinit, 2), f32)],
        compiler_params=params,
    )(x, wp_k)
    sc1 = _bn_affine(st1, N, g1, b1)

    if n2 > 0:
        # ---- call 2: BN2 partial stats only (x1_norm / x2 never hit HBM) --
        st2 = pl.pallas_call(
            _stats2_kernel(Kd=Kd, m=m, Cc=Ccheap, relu=relu, cdt=cdt),
            grid=(nt,),
            in_specs=[pl.BlockSpec((bpt, Cinit, L), tile3), full(sc1), full(wd_k)],
            out_specs=pl.BlockSpec((None, Ccheap, 2), tile3),
            out_shape=jax.ShapeDtypeStruct((nt, Ccheap, 2), f32),
            compiler_params=params,
        )(x1_raw, sc1, wd_k)
        sc2 = _bn_affine(st2, N, g2, b2)
        finish_in = (x1_raw, sc1, sc2, wd_k)
        finish_specs = [pl.BlockSpec((bpt, Cinit, L), tile3),
                        full(sc1), full(sc2), full(wd_k)]
    else:                      # output keeps only x1 channels -> skip BN2 entirely
        finish_in = (x1_raw, sc1)
        finish_specs = [pl.BlockSpec((bpt, Cinit, L), tile3), full(sc1)]

    # ---- call 3: recompute, normalize and write the output block directly --
    out = pl.pallas_call(
        _finish_kernel(Kd=Kd, m=m, Cc=Ccheap, n1=n1, n2=n2, c_final=c_final,
                       relu=relu, cdt=cdt),
        grid=(nt,),
        in_specs=finish_specs,
        out_specs=pl.BlockSpec((bpt, c_final, L), tile3),
        out_shape=jax.ShapeDtypeStruct((B, c_final, L), odt),
        compiler_params=params,
    )(*finish_in)
    return out


# ---------------------------------------------------------------------------
# pure-JAX reference + self-test
# ---------------------------------------------------------------------------
def _ref_forward(x, wp, wd, g1, b1, g2, b2, relu=True):
    """Independent pure-JAX reference (lax.conv, NCL layout, training-mode BN)."""
    Cin = x.shape[1]
    Cinit, _, Kp = wp.shape
    Ccheap, _, Kd = wd.shape

    def bn_act(y, g, b):
        mean = jnp.mean(y, axis=(0, 2), keepdims=True)
        var = jnp.mean((y - mean) ** 2, axis=(0, 2), keepdims=True)
        yh = (y - mean) * lax.rsqrt(var + _EPS) * g[None, :, None] + b[None, :, None]
        return jnp.maximum(yh, 0.0) if relu else yh

    dn = ("NCH", "OIH", "NCH")
    hi = lax.Precision.HIGHEST
    x1 = lax.conv_general_dilated(x, wp, (1,), [(Kp // 2, Kp // 2)],
                                  dimension_numbers=dn, precision=hi)
    x1 = bn_act(x1, g1, b1)
    x2 = lax.conv_general_dilated(x1, wd, (1,), [(Kd // 2, Kd // 2)],
                                  dimension_numbers=dn,
                                  feature_group_count=Cinit, precision=hi)
    x2 = bn_act(x2, g2, b2)
    if x2.shape[1] < x1.shape[1]:
        x2 = jnp.pad(x2, ((0, 0), (0, x1.shape[1] - x2.shape[1]), (0, 0)))
    out = jnp.concatenate([x1, x2], axis=1)
    return out[:, :Cin, :]


if __name__ == "__main__":
    def run_case(B, Cin, L, out_channels, ratio, kernel_size, dw_size, relu,
                 rand_affine=False):
        Cinit = max(1, int(out_channels / ratio))
        Ccheap = out_channels - Cinit
        keys = jax.random.split(jax.random.PRNGKey(0), 5)
        x = jax.random.normal(keys[0], (B, Cin, L), jnp.float32)
        wp = 0.3 * jax.random.normal(keys[1], (Cinit, Cin, kernel_size), jnp.float32)
        wd = 0.3 * jax.random.normal(keys[2], (Ccheap, 1, dw_size), jnp.float32)
        if rand_affine:
            g1 = 1.0 + 0.1 * jax.random.normal(keys[3], (Cinit,), jnp.float32)
            b1 = 0.1 * jax.random.normal(keys[4], (Cinit,), jnp.float32)
            g2 = 1.0 + 0.05 * jnp.arange(Ccheap, dtype=jnp.float32)
            b2 = 0.02 * jnp.arange(Ccheap, dtype=jnp.float32)
        else:
            g1 = jnp.ones((Cinit,), jnp.float32)
            b1 = jnp.zeros((Cinit,), jnp.float32)
            g2 = jnp.ones((Ccheap,), jnp.float32)
            b2 = jnp.zeros((Ccheap,), jnp.float32)

        fwd = jax.jit(partial(ghost_module_forward, relu=relu))
        out = jax.block_until_ready(fwd(x, wp, wd, g1, b1, g2, b2))
        ref = _ref_forward(x, wp, wd, g1, b1, g2, b2, relu=relu)
        assert out.shape == ref.shape, (out.shape, ref.shape)
        err = float(jnp.max(jnp.abs(out - ref)))
        # tolerance covers bf16 storage of the x1 intermediate plus MXU pass
        # precision vs. the HIGHEST-precision XLA reference; real bugs show up
        # as O(0.3+) errors here.
        assert err < 6e-2, f"max abs err {err}"

    # GhostModule(4, 8) defaults at the suggested small shape (output == x1 path)
    run_case(B=2, Cin=4, L=16, out_channels=8, ratio=2, kernel_size=1, dw_size=3,
             relu=True)
    # full x1+x2 path, depthwise cheap conv, two-tile grid (cross-tile BN phases)
    run_case(B=8, Cin=16, L=256, out_channels=16, ratio=2, kernel_size=1, dw_size=3,
             relu=True)
    # non-default: 3-tap primary conv, grouped multiplier m=3, relu=False
    run_case(B=3, Cin=6, L=40, out_channels=12, ratio=4, kernel_size=3, dw_size=3,
             relu=False, rand_affine=True)

    print("KERNEL_OK")
</pallas_src>

<mosaic_0001>
module attributes {stable_mosaic.version = 11 : i64} {
  func.func @kernel(%arg0: i32, %arg1: memref<1x4x16xf32, #tpu.memory_space<vmem>>, %arg2: memref<1x4x4xf32, #tpu.memory_space<vmem>>, %arg3: memref<1x4x16xbf16, #tpu.memory_space<vmem>>, %arg4: memref<1x4x2xf32, #tpu.memory_space<vmem>>) attributes {dimension_semantics = [#tpu.dimension_semantics<parallel>], iteration_bounds = array<i64: 2>, scalar_prefetch = 0 : i64, scratch_operands = 0 : i64, tpu.core_type = #tpu.core_type<tc>, window_params = [{transform_indices = @transform_0, window_bounds = array<i64: 1, 4, 16>}, {pipeline_mode = #tpu.pipeline_mode<synchronous>, transform_indices = @transform_1, window_bounds = array<i64: 1, 4, 4>}, {transform_indices = @transform_2, window_bounds = array<i64: 1, 4, 16>}, {transform_indices = @transform_3, window_bounds = array<i64: 1, 4, 2>}]} {
    %c0 = arith.constant 0 : index
    %c0_0 = arith.constant 0 : index
    %c0_1 = arith.constant 0 : index
    %0 = vector.load %arg1[%c0, %c0_0, %c0_1] : memref<1x4x16xf32, #tpu.memory_space<vmem>>, vector<1x4x16xf32>
    %c0_2 = arith.constant 0 : index
    %c0_3 = arith.constant 0 : index
    %c0_4 = arith.constant 0 : index
    %1 = vector.load %arg2[%c0_2, %c0_3, %c0_4] : memref<1x4x4xf32, #tpu.memory_space<vmem>>, vector<1x4x4xf32>
    %2 = vector.shape_cast %1 : vector<1x4x4xf32> to vector<4x4xf32>
    %3 = vector.shape_cast %2 : vector<4x4xf32> to vector<1x4x4xf32>
    "tpu.trace_start"() <{level = 10 : i32, message = "bok,bkl->bol"}> : () -> ()
    %cst = arith.constant dense<0.000000e+00> : vector<1x4x16xf32>
    %4 = tpu.matmul %3, %0, %cst {dimension_numbers = #tpu.dot_dimension_numbers<[2], [1], [1], [2], [0, 0, 0, 1, 1, 2], [0], [0]>} : vector<1x4x4xf32>, vector<1x4x16xf32>, vector<1x4x16xf32> -> vector<1x4x16xf32>
    "tpu.trace_stop"() : () -> ()
    %5 = arith.truncf %4 : vector<1x4x16xf32> to vector<1x4x16xbf16>
    %c0_5 = arith.constant 0 : index
    %c0_6 = arith.constant 0 : index
    %c0_7 = arith.constant 0 : index
    %6 = vector.load %arg3[%c0_5, %c0_6, %c0_7] : memref<1x4x16xbf16, #tpu.memory_space<vmem>>, vector<1x4x16xbf16>
    tpu.vector_store %arg3[%c0_5, %c0_6, %c0_7], %5 {strides = array<i32>} : memref<1x4x16xbf16, #tpu.memory_space<vmem>>, vector<1x4x16xbf16>,
    %7 = arith.extf %5 : vector<1x4x16xbf16> to vector<1x4x16xf32>
    %cst_8 = arith.constant dense<0.000000e+00> : vector<4x16xf32>
    %8 = vector.multi_reduction <add>, %7, %cst_8 [0] : vector<1x4x16xf32> to vector<4x16xf32>
    %9 = arith.mulf %7, %7 : vector<1x4x16xf32>
    %cst_9 = arith.constant dense<0.000000e+00> : vector<4x16xf32>
    %10 = vector.multi_reduction <add>, %9, %cst_9 [0] : vector<1x4x16xf32> to vector<4x16xf32>
    %cst_10 = arith.constant dense<0.000000e+00> : vector<4xf32>
    %11 = vector.multi_reduction <add>, %8, %cst_10 [1] : vector<4x16xf32> to vector<4xf32>
    %12 = vector.shape_cast %11 : vector<4xf32> to vector<4x1xf32>
    %cst_11 = arith.constant dense<0.000000e+00> : vector<4xf32>
    %13 = vector.multi_reduction <add>, %10, %cst_11 [1] : vector<4x16xf32> to vector<4xf32>
    %14 = vector.shape_cast %13 : vector<4xf32> to vector<4x1xf32>
    %15 = tpu.concatenate %12, %14 in 1 : vector<4x1xf32>, vector<4x1xf32> -> vector<4x2xf32>
    %c0_12 = arith.constant 0 : index
    %c0_13 = arith.constant 0 : index
    %c0_14 = arith.constant 0 : index
    %16 = vector.load %arg4[%c0_12, %c0_13, %c0_14] : memref<1x4x2xf32, #tpu.memory_space<vmem>>, vector<1x4x2xf32>
    %17 = vector.shape_cast %16 : vector<1x4x2xf32> to vector<4x2xf32>
    %18 = vector.shape_cast %15 : vector<4x2xf32> to vector<1x4x2xf32>
    tpu.vector_store %arg4[%c0_12, %c0_13, %c0_14], %18 {strides = array<i32>} : memref<1x4x2xf32, #tpu.memory_space<vmem>>, vector<1x4x2xf32>,
    return
  }
  func.func @transform_0(%arg0: i32) -> (i32, i32, i32) {
    %c0_i32 = arith.constant 0 : i32
    %c0_i32_0 = arith.constant 0 : i32
    %c0_i32_1 = arith.constant 0 : i32
    return %arg0, %c0_i32, %c0_i32_0 : i32, i32, i32
  }
  func.func @transform_1(%arg0: i32) -> (i32, i32, i32) {
    %c0_i32 = arith.constant 0 : i32
    %c0_i32_0 = arith.constant 0 : i32
    %c0_i32_1 = arith.constant 0 : i32
    %c0_i32_2 = arith.constant 0 : i32
    return %c0_i32, %c0_i32_0, %c0_i32_1 : i32, i32, i32
  }
  func.func @transform_2(%arg0: i32) -> (i32, i32, i32) {
    %c0_i32 = arith.constant 0 : i32
    %c0_i32_0 = arith.constant 0 : i32
    %c0_i32_1 = arith.constant 0 : i32
    return %arg0, %c0_i32, %c0_i32_0 : i32, i32, i32
  }
  func.func @transform_3(%arg0: i32) -> (i32, i32, i32) {
    %c0_i32 = arith.constant 0 : i32
    %c0_i32_0 = arith.constant 0 : i32
    %c0_i32_1 = arith.constant 0 : i32
    return %arg0, %c0_i32, %c0_i32_0 : i32, i32, i32
  }
}

module attributes {stable_mosaic.version = 11 : i64} {
  func.func @kernel(%arg0: i32, %arg1: memref<1x4x16xbf16, #tpu.memory_space<vmem>>, %arg2: memref<4x2xf32, #tpu.memory_space<vmem>>, %arg3: memref<1x4x16xf32, #tpu.memory_space<vmem>>) attributes {dimension_semantics = [#tpu.dimension_semantics<parallel>], iteration_bounds = array<i64: 2>, scalar_prefetch = 0 : i64, scratch_operands = 0 : i64, tpu.core_type = #tpu.core_type<tc>, window_params = [{transform_indices = @transform_0, window_bounds = array<i64: 1, 4, 16>}, {pipeline_mode = #tpu.pipeline_mode<synchronous>, transform_indices = @transform_1, window_bounds = array<i64: 4, 2>}, {transform_indices = @transform_2, window_bounds = array<i64: 1, 4, 16>}]} {
    %c0 = arith.constant 0 : index
    %c0_0 = arith.constant 0 : index
    %c0_1 = arith.constant 0 : index
    %0 = vector.load %arg1[%c0, %c0_0, %c0_1] : memref<1x4x16xbf16, #tpu.memory_space<vmem>>, vector<1x4x16xbf16>
    %c0_2 = arith.constant 0 : index
    %c0_3 = arith.constant 0 : index
    %1 = vector.load %arg2[%c0_2, %c0_3] : memref<4x2xf32, #tpu.memory_space<vmem>>, vector<4x2xf32>
    %2 = arith.extf %0 : vector<1x4x16xbf16> to vector<1x4x16xf32>
    %3 = vector.extract_strided_slice %1 {offsets = [0, 0], sizes = [4, 1], strides = [1, 1]} : vector<4x2xf32> to vector<4x1xf32>
    %4 = vector.shape_cast %3 : vector<4x1xf32> to vector<1x4x1xf32>
    %5 = vector.broadcast %4 : vector<1x4x1xf32> to vector<1x4x16xf32>
    %6 = arith.mulf %2, %5 : vector<1x4x16xf32>
    %7 = vector.extract_strided_slice %1 {offsets = [0, 1], sizes = [4, 1], strides = [1, 1]} : vector<4x2xf32> to vector<4x1xf32>
    %8 = vector.shape_cast %7 : vector<4x1xf32> to vector<1x4x1xf32>
    %9 = vector.broadcast %8 : vector<1x4x1xf32> to vector<1x4x16xf32>
    %10 = arith.addf %6, %9 : vector<1x4x16xf32>
    %cst = arith.constant 0.000000e+00 : f32
    %11 = vector.broadcast %cst : f32 to vector<1x4x16xf32>
    %12 = arith.maximumf %10, %11 : vector<1x4x16xf32>
    %c0_4 = arith.constant 0 : index
    %c0_5 = arith.constant 0 : index
    %c0_6 = arith.constant 0 : index
    %13 = vector.load %arg3[%c0_4, %c0_5, %c0_6] : memref<1x4x16xf32, #tpu.memory_space<vmem>>, vector<1x4x16xf32>
    tpu.vector_store %arg3[%c0_4, %c0_5, %c0_6], %12 {strides = array<i32>} : memref<1x4x16xf32, #tpu.memory_space<vmem>>, vector<1x4x16xf32>,
    return
  }
  func.func @transform_0(%arg0: i32) -> (i32, i32, i32) {
    %c0_i32 = arith.constant 0 : i32
    %c0_i32_0 = arith.constant 0 : i32
    %c0_i32_1 = arith.constant 0 : i32
    return %arg0, %c0_i32, %c0_i32_0 : i32, i32, i32
  }
  func.func @transform_1(%arg0: i32) -> (i32, i32) {
    %c0_i32 = arith.constant 0 : i32
    %c0_i32_0 = arith.constant 0 : i32
    %c0_i32_1 = arith.constant 0 : i32
    return %c0_i32, %c0_i32_0 : i32, i32
  }
  func.func @transform_2(%arg0: i32) -> (i32, i32, i32) {
    %c0_i32 = arith.constant 0 : i32
    %c0_i32_0 = arith.constant 0 : i32
    %c0_i32_1 = arith.constant 0 : i32
    return %arg0, %c0_i32, %c0_i32_0 : i32, i32, i32
  }
}

</mosaic_0001>

<llo_original>
// kernel: ghost_module_forward.3
$region0: #{ghost_module_forward.3}
  #allocation0 [shape = 'u32[]', space=smem, size = 0x4, offset = 0x4, fixed_abs, tag = 'smem constant byte address 0x4 - core index']
  #allocation1 [shape = 'u32[144,128]{1,0:T(1,128)}', space=vmem, size = 0x12000, scoped, tag = 'internal scratch']
  %s0 = inlined_call_operand.vmem [shape: bf16[2,4,16], index: 0, kind: input, shape index: {}]
  %s1 = inlined_call_operand.vmem [shape: f32[4,2], index: 1, kind: input, shape index: {}]
  %s2 = inlined_call_operand.hbm [shape: f32[2,4,16], index: 2, kind: output, shape index: {}]
  %s3 = sld [smem:[#allocation0]]
  $region41: #{ghost_module_forward.3} parent=0
    _
  %s5 = ssub.s32 1, %s3
  %s6 = scalar_select 0, %s5, %s3
  $region1: #{ghost_module_forward.3} parent=0
    #allocation2 [shape = 'u8[4096]{0}', space=vmem, size = 0x1000, scoped, tag = 'output window, operand 0']
    #allocation3 [shape = 's32[2]{0}', space=sflag, size = 0x8, scoped, tag = 'scoped memory for ghost_module_forward.3']
    %7 = vsyncpa [#allocation3], 0
    %s8 = scalar_lea.sflag [#allocation3], 1
    %9 = vsyncpa %s8, 0
    loop: start=0, step=1, limit=4
    $region2: #{ghost_module_forward.3} parent=1 // loop_pre_header
      _
    $region3: #{ghost_module_forward.3} parent=1 // loop_header
      %s11 = sphi 0, %s15
      %p12 = scmp.ge.s32.totalorder %s11, 4
      %s21 = sphi 0, %s23
      %s24 = sphi 0, %s21
      %s25 = sphi 0, %s24
      %s41 = sphi 0, %s25
      %s45 = sphi 0, %s45
      %s47 = sphi 0, %s45
      %s48 = sphi 0, %s47
      %s62 = sphi 0, %s48
      %s68 = sphi 0, %s70
      %s71 = sphi 0, %s68
      %s72 = sphi 0, %s71
      %s88 = sphi 0, %s72
    $region4: #{ghost_module_forward.3} parent=1 // loop_header_branch
      %14 = sbr.rel (%p12) target = $region8
    $region5: #{ghost_module_forward.3} parent=1 // loop_body
      %s16 = ssub.s32 %s11, 1
      %s17 = ssub.s32 %s11, 2
      %s18 = sadd.s32 %s11, 1
      %s19 = ssub.s32 %s11, %s18
      %p20 = scmp.eq.s32.totalorder %s19, 0
      %s22 = sadd.s32 %s21, 1
      %s23 = scalar_select %p20, %s21, %s22
      %p26 = pneg %p20
      %p27 = scmp.eq.s32.totalorder %s11, 1
      %p28 = por %p26, %p27
      %p29 = scmp.ne.s32.totalorder %s21, %s24
      %p30 = scmp.eq.s32.totalorder %s11, 0
      %p31 = por %p29, %p30
      %p32 = scmp.ne.s32.totalorder %s21, %s24
      %p33 = scmp.eq.s32.totalorder %s16, 1
      %p34 = por %p32, %p33
      %p35 = scmp.ne.s32.totalorder %s24, %s25
      %p36 = scmp.eq.s32.totalorder %s16, 0
      %p37 = por %p35, %p36
      %p38 = scmp.ne.s32.totalorder %s24, %s25
      %p39 = scmp.eq.s32.totalorder %s17, 1
      %p40 = por %p38, %p39
      %p42 = scmp.ne.s32.totalorder %s25, %s41
      %p43 = scmp.eq.s32.totalorder %s17, 0
      %p44 = por %p42, %p43
      %s46 = sadd.s32 %s45, 1
      %p49 = scmp.eq.s32.totalorder %s11, 1
      %p50 = scmp.ne.s32.totalorder %s45, %s47
      %p51 = scmp.eq.s32.totalorder %s11, 0
      %p52 = por %p50, %p51
      %p53 = scmp.ne.s32.totalorder %s45, %s47
      %p54 = scmp.eq.s32.totalorder %s16, 1
      %p55 = por %p53, %p54
      %p56 = scmp.ne.s32.totalorder %s47, %s48
      %p57 = scmp.eq.s32.totalorder %s16, 0
      %p58 = por %p56, %p57
      %p59 = scmp.ne.s32.totalorder %s47, %s48
      %p60 = scmp.eq.s32.totalorder %s17, 1
      %p61 = por %p59, %p60
      %p63 = scmp.ne.s32.totalorder %s48, %s62
      %p64 = scmp.eq.s32.totalorder %s17, 0
      %p65 = por %p63, %p64
      %s66 = ssub.s32 %s11, %s18
      %p67 = scmp.eq.s32.totalorder %s66, 0
      %s69 = sadd.s32 %s68, 1
      %s70 = scalar_select %p67, %s68, %s69
      %p73 = pneg %p67
      %p74 = scmp.eq.s32.totalorder %s11, 1
      %p75 = por %p73, %p74
      %p76 = scmp.ne.s32.totalorder %s68, %s71
      %p77 = scmp.eq.s32.totalorder %s11, 0
      %p78 = por %p76, %p77
      %p79 = scmp.ne.s32.totalorder %s68, %s71
      %p80 = scmp.eq.s32.totalorder %s16, 1
      %p81 = por %p79, %p80
      %p82 = scmp.ne.s32.totalorder %s71, %s72
      %p83 = scmp.eq.s32.totalorder %s16, 0
      %p84 = por %p82, %p83
      %p85 = scmp.ne.s32.totalorder %s71, %s72
      %p86 = scmp.eq.s32.totalorder %s17, 1
      %p87 = por %p85, %p86
      %p89 = scmp.ne.s32.totalorder %s72, %s88
      %p90 = scmp.eq.s32.totalorder %s17, 0
      %p91 = por %p89, %p90
      %p92 = scmp.le.s32.totalorder 1, %s11
      %p93 = scmp.lt.s32.totalorder %s11, 3
      %p94 = pnand %p92, %p93
      %p95 = pneg %p94
      // Predicated region
      $region9: #{ghost_module_forward.3} parent=5 // pred_check
        _
      $region10: #{ghost_module_forward.3} parent=5 // pred_check_branch
        %97 = sbr.rel (%p94) target = $region12
      $region11: #{ghost_module_forward.3} parent=5 // pred_region
        %s98 = ssub.s32 %s11, 1
        // Predicated region
        $region13: #{ghost_module_forward.3} parent=11 // pred_check
          %p99 = pneg %p58
        $region14: #{ghost_module_forward.3} parent=11 // pred_check_branch
          %101 = sbr.rel (%p99) target = $region16
        $region15: #{ghost_module_forward.3} parent=11 // pred_region
          _
        $region16: #{ghost_module_forward.3} parent=11 // pred_fallthru
          _
      $region12: #{ghost_module_forward.3} parent=5 // pred_fallthru
        _
      %p102 = scmp.lt.s32.totalorder %s11, 2
      // Predicated region
      $region17: #{ghost_module_forward.3} parent=5 // pred_check
        %p103 = pneg %p102
      $region18: #{ghost_module_forward.3} parent=5 // pred_check_branch
        %105 = sbr.rel (%p103) target = $region20
      $region19: #{ghost_module_forward.3} parent=5 // pred_region
        // Predicated region
        $region21: #{ghost_module_forward.3} parent=19 // pred_check
          %p106 = pneg %p31
        $region22: #{ghost_module_forward.3} parent=19 // pred_check_branch
          %108 = sbr.rel (%p106) target = $region24
        $region23: #{ghost_module_forward.3} parent=19 // pred_region
          %p109 = scmp.lt.s32.totalorder %s11, 1
          %s110 = scalar_select %p109, %s11, 1
          %s111 = smul.addr %s110, 2
          %s112 = scalar_lea.vmem %s0, %s111
        $region24: #{ghost_module_forward.3} parent=19 // pred_fallthru
          _
      $region20: #{ghost_module_forward.3} parent=5 // pred_fallthru
        _
      %p113 = scmp.le.s32.totalorder 1, %s11
      %p114 = scmp.lt.s32.totalorder %s11, 3
      %p115 = pnand %p113, %p114
      %p116 = pneg %p115
      // Predicated region
      $region25: #{ghost_module_forward.3} parent=5 // pred_check
        _
      $region26: #{ghost_module_forward.3} parent=5 // pred_check_branch
        %118 = sbr.rel (%p115) target = $region28
      $region27: #{ghost_module_forward.3} parent=5 // pred_region
        %s119 = ssub.s32 %s11, 1
        %p120 = scmp.lt.s32.totalorder %s16, 1
        %s121 = scalar_select %p120, %s16, 1
        %s122 = smul.addr %s121, 2
        %s123 = scalar_lea.vmem %s0, %s122
        %p124 = pneg %p37
        %p125 = pneg %p34
        %p126 = pneg %p58
        %p127 = pneg %p55
        %p128 = pneg %p84
        %p129 = pneg %p81
        %s130 = sand.u32 %s71, 1
        %s131 = scalar_lea.sflag [#allocation3], %s130
        %s132 = sand.u32 %s71, 1
        %s133 = smul.addr %s132, 4
        %s134 = scalar_lea.vmem [#allocation2], %s133
        %p135 = scmp.lt.s32.totalorder %s16, 1
        %s136 = scalar_select %p135, %s16, 1
        %s137 = smul.addr %s136, 2
        %s138 = scalar_lea.vmem %s0, %s137
        %v139 = vld [vmem:[%s138] sm:$0x3]
        %v140 = vld [vmem:[%s1] sm:$0xf]
        %v141 = vunpack.c.l.bf16 %v139
        %143 = vset.pattern.permute.xlu0 0
        %144 = vperm.xlu0 %143, %v140
        %v145 = vpop.permute.xlu0 %144
        %v147 = vmul.f32 %v141, %v145
        %148 = vset.pattern.permute.xlu0 1
        %149 = vperm.xlu0 %148, %v140
        %v150 = vpop.permute.xlu0 %149
        %v152 = vadd.f32 %v147, %v150
        %v153 = vmax.f32 %v152, 0.0
        %vm154 = vcmask 125952
        %155 = vst.msk [vmem:[%s134] sm:$0xf] %vm154, %v153
        %s156 = sand.u32 %s71, 1
        %s157 = scalar_lea.sflag [#allocation3], %s156
        %s158 = sand.u32 %s71, 1
        %s159 = smul.addr %s158, 4
        %s160 = scalar_lea.vmem [#allocation2], %s159
        // Predicated region
        $region29: #{ghost_module_forward.3} parent=27 // pred_check
          %p161 = pneg %p81
        $region30: #{ghost_module_forward.3} parent=27 // pred_check_branch
          %163 = sbr.rel (%p161) target = $region32
        $region31: #{ghost_module_forward.3} parent=27 // pred_region
          %s165 = ssub.s32 64, 64
          %166 = vsyncadd %s157, %s165
          %s167 = smul.addr %s16, 64
          %s168 = scalar_lea.hbm %s2, %s167
          %s170 = sshll.u32 %s160, 4
          %s171 = int_to_ptr.vmem [resolvable:$true] %s170
          %173 = dma.vmem_to_hbm [thread:$0]  %s171, 64, %s168, %s157
        $region32: #{ghost_module_forward.3} parent=27 // pred_fallthru
          _
      $region28: #{ghost_module_forward.3} parent=5 // pred_fallthru
        _
      %p174 = scmp.le.s32.totalorder 2, %s11
      // Predicated region
      $region33: #{ghost_module_forward.3} parent=5 // pred_check
        %p175 = pneg %p174
      $region34: #{ghost_module_forward.3} parent=5 // pred_check_branch
        %177 = sbr.rel (%p175) target = $region36
      $region35: #{ghost_module_forward.3} parent=5 // pred_region
        %s178 = ssub.s32 %s11, 2
        // Predicated region
        $region37: #{ghost_module_forward.3} parent=35 // pred_check
          %p179 = pneg %p87
        $region38: #{ghost_module_forward.3} parent=35 // pred_check_branch
          %181 = sbr.rel (%p179) target = $region40
        $region39: #{ghost_module_forward.3} parent=35 // pred_region
          %s182 = sand.u32 %s72, 1
          %s183 = scalar_lea.sflag [#allocation3], %s182
          %s184 = sand.u32 %s72, 1
          %s185 = smul.addr %s184, 4
          %s186 = scalar_lea.vmem [#allocation2], %s185
          %187 = dma.done %s183, 64
        $region40: #{ghost_module_forward.3} parent=35 // pred_fallthru
          _
      $region36: #{ghost_module_forward.3} parent=5 // pred_fallthru
        _
    $region6: #{ghost_module_forward.3} parent=1 // loop_footer
      %s15 = sadd.s32 1, %s11
    $region7: #{ghost_module_forward.3} parent=1 // loop_footer_branch
      %10 = sbr.rel target = $region3
    $region8: #{ghost_module_forward.3} parent=1 // loop_exit
      _
    %188 = vsyncpa [#allocation3], 1
    %s189 = scalar_lea.sflag [#allocation3], 1
    %190 = vsyncpa %s189, 1

// kernel: ghost_module_forward.2
$region0: #{ghost_module_forward.2}
  #allocation0 [shape = 'u32[]', space=smem, size = 0x4, offset = 0x4, fixed_abs, tag = 'smem constant byte address 0x4 - core index']
  #allocation1 [shape = 'u32[144,128]{1,0:T(1,128)}', space=vmem, size = 0x12000, scoped, tag = 'internal scratch']
  %s0 = inlined_call_operand.hbm [shape: f32[2,4,16], index: 0, kind: input, shape index: {}]
  %s1 = inlined_call_operand.hbm [shape: f32[1,4,4], index: 1, kind: input, shape index: {}]
  %s2 = inlined_call_operand.vmem [shape: bf16[2,4,16], index: 2, kind: output, shape index: {0}]
  %s3 = inlined_call_operand.vmem [shape: f32[2,4,2], index: 3, kind: output, shape index: {1}]
  %4 = xla_tuple %s2, %s3
  %s5 = sld [smem:[#allocation0]]
  $region57: #{ghost_module_forward.2} parent=0
    _
  %s7 = ssub.s32 1, %s5
  %s8 = scalar_select 0, %s7, %s5
  $region1: #{ghost_module_forward.2} parent=0
    #allocation2 [shape = 'u8[4096]{0}', space=vmem, size = 0x1000, scoped, tag = 'input window, operand 0']
    #allocation3 [shape = 's32[2]{0}', space=sflag, size = 0x8, scoped, tag = 'scoped memory for ghost_module_forward.2']
    #allocation4 [shape = 'u8[2048]{0}', space=vmem, size = 0x800, scoped, tag = 'input window, operand 1, single buffered']
    #allocation5 [shape = 's32[1]{0}', space=sflag, size = 0x4, scoped, tag = 'scoped memory for ghost_module_forward.2']
    %9 = vsyncpa [#allocation3], 0
    %s10 = scalar_lea.sflag [#allocation3], 1
    %11 = vsyncpa %s10, 0
    %12 = vsyncpa [#allocation5], 0
    loop: start=0, step=1, limit=4
    $region2: #{ghost_module_forward.2} parent=1 // loop_pre_header
      _
    $region3: #{ghost_module_forward.2} parent=1 // loop_header
      %s14 = sphi 0, %s18
      %p15 = scmp.ge.s32.totalorder %s14, 4
      %s24 = sphi 0, %s26
      %s27 = sphi 0, %s24
      %s28 = sphi 0, %s27
      %s44 = sphi 0, %s28
      %s48 = sphi 0, %s48
      %s50 = sphi 0, %s48
      %s51 = sphi 0, %s50
      %s65 = sphi 0, %s51
      %s71 = sphi 0, %s73
      %s74 = sphi 0, %s71
      %s75 = sphi 0, %s74
      %s91 = sphi 0, %s75
      %s97 = sphi 0, %s99
      %s100 = sphi 0, %s97
      %s101 = sphi 0, %s100
      %s117 = sphi 0, %s101
    $region4: #{ghost_module_forward.2} parent=1 // loop_header_branch
      %17 = sbr.rel (%p15) target = $region8
    $region5: #{ghost_module_forward.2} parent=1 // loop_body
      %s19 = ssub.s32 %s14, 1
      %s20 = ssub.s32 %s14, 2
      %s21 = sadd.s32 %s14, 1
      %s22 = ssub.s32 %s14, %s21
      %p23 = scmp.eq.s32.totalorder %s22, 0
      %s25 = sadd.s32 %s24, 1
      %s26 = scalar_select %p23, %s24, %s25
      %p29 = pneg %p23
      %p30 = scmp.eq.s32.totalorder %s14, 1
      %p31 = por %p29, %p30
      %p32 = scmp.ne.s32.totalorder %s24, %s27
      %p33 = scmp.eq.s32.totalorder %s14, 0
      %p34 = por %p32, %p33
      %p35 = scmp.ne.s32.totalorder %s24, %s27
      %p36 = scmp.eq.s32.totalorder %s19, 1
      %p37 = por %p35, %p36
      %p38 = scmp.ne.s32.totalorder %s27, %s28
      %p39 = scmp.eq.s32.totalorder %s19, 0
      %p40 = por %p38, %p39
      %p41 = scmp.ne.s32.totalorder %s27, %s28
      %p42 = scmp.eq.s32.totalorder %s20, 1
      %p43 = por %p41, %p42
      %p45 = scmp.ne.s32.totalorder %s28, %s44
      %p46 = scmp.eq.s32.totalorder %s20, 0
      %p47 = por %p45, %p46
      %s49 = sadd.s32 %s48, 1
      %p52 = scmp.eq.s32.totalorder %s14, 1
      %p53 = scmp.ne.s32.totalorder %s48, %s50
      %p54 = scmp.eq.s32.totalorder %s14, 0
      %p55 = por %p53, %p54
      %p56 = scmp.ne.s32.totalorder %s48, %s50
      %p57 = scmp.eq.s32.totalorder %s19, 1
      %p58 = por %p56, %p57
      %p59 = scmp.ne.s32.totalorder %s50, %s51
      %p60 = scmp.eq.s32.totalorder %s19, 0
      %p61 = por %p59, %p60
      %p62 = scmp.ne.s32.totalorder %s50, %s51
      %p63 = scmp.eq.s32.totalorder %s20, 1
      %p64 = por %p62, %p63
      %p66 = scmp.ne.s32.totalorder %s51, %s65
      %p67 = scmp.eq.s32.totalorder %s20, 0
      %p68 = por %p66, %p67
      %s69 = ssub.s32 %s14, %s21
      %p70 = scmp.eq.s32.totalorder %s69, 0
      %s72 = sadd.s32 %s71, 1
      %s73 = scalar_select %p70, %s71, %s72
      %p76 = pneg %p70
      %p77 = scmp.eq.s32.totalorder %s14, 1
      %p78 = por %p76, %p77
      %p79 = scmp.ne.s32.totalorder %s71, %s74
      %p80 = scmp.eq.s32.totalorder %s14, 0
      %p81 = por %p79, %p80
      %p82 = scmp.ne.s32.totalorder %s71, %s74
      %p83 = scmp.eq.s32.totalorder %s19, 1
      %p84 = por %p82, %p83
      %p85 = scmp.ne.s32.totalorder %s74, %s75
      %p86 = scmp.eq.s32.totalorder %s19, 0
      %p87 = por %p85, %p86
      %p88 = scmp.ne.s32.totalorder %s74, %s75
      %p89 = scmp.eq.s32.totalorder %s20, 1
      %p90 = por %p88, %p89
      %p92 = scmp.ne.s32.totalorder %s75, %s91
      %p93 = scmp.eq.s32.totalorder %s20, 0
      %p94 = por %p92, %p93
      %s95 = ssub.s32 %s14, %s21
      %p96 = scmp.eq.s32.totalorder %s95, 0
      %s98 = sadd.s32 %s97, 1
      %s99 = scalar_select %p96, %s97, %s98
      %p102 = pneg %p96
      %p103 = scmp.eq.s32.totalorder %s14, 1
      %p104 = por %p102, %p103
      %p105 = scmp.ne.s32.totalorder %s97, %s100
      %p106 = scmp.eq.s32.totalorder %s14, 0
      %p107 = por %p105, %p106
      %p108 = scmp.ne.s32.totalorder %s97, %s100
      %p109 = scmp.eq.s32.totalorder %s19, 1
      %p110 = por %p108, %p109
      %p111 = scmp.ne.s32.totalorder %s100, %s101
      %p112 = scmp.eq.s32.totalorder %s19, 0
      %p113 = por %p111, %p112
      %p114 = scmp.ne.s32.totalorder %s100, %s101
      %p115 = scmp.eq.s32.totalorder %s20, 1
      %p116 = por %p114, %p115
      %p118 = scmp.ne.s32.totalorder %s101, %s117
      %p119 = scmp.eq.s32.totalorder %s20, 0
      %p120 = por %p118, %p119
      %p121 = scmp.le.s32.totalorder 1, %s14
      %p122 = scmp.lt.s32.totalorder %s14, 3
      %p123 = pnand %p121, %p122
      %p124 = pneg %p123
      // Predicated region
      $region9: #{ghost_module_forward.2} parent=5 // pred_check
        _
      $region10: #{ghost_module_forward.2} parent=5 // pred_check_branch
        %126 = sbr.rel (%p123) target = $region12
      $region11: #{ghost_module_forward.2} parent=5 // pred_region
        %s127 = ssub.s32 %s14, 1
        // Predicated region
        $region13: #{ghost_module_forward.2} parent=11 // pred_check
          %p128 = pneg %p61
        $region14: #{ghost_module_forward.2} parent=11 // pred_check_branch
          %130 = sbr.rel (%p128) target = $region16
        $region15: #{ghost_module_forward.2} parent=11 // pred_region
          %s132 = ssub.s32 64, 64
          %133 = vsyncadd [#allocation5], %s132
          %s135 = sshll.u32 [#allocation4], 4
          %s136 = int_to_ptr.vmem [resolvable:$true] %s135
          %138 = dma.hbm_to_vmem [thread:$0]  %s1, 64, %s136, [#allocation5]
        $region16: #{ghost_module_forward.2} parent=11 // pred_fallthru
          _
      $region12: #{ghost_module_forward.2} parent=5 // pred_fallthru
        _
      %p139 = scmp.lt.s32.totalorder %s14, 2
      // Predicated region
      $region17: #{ghost_module_forward.2} parent=5 // pred_check
        %p140 = pneg %p139
      $region18: #{ghost_module_forward.2} parent=5 // pred_check_branch
        %142 = sbr.rel (%p140) target = $region20
      $region19: #{ghost_module_forward.2} parent=5 // pred_region
        // Predicated region
        $region21: #{ghost_module_forward.2} parent=19 // pred_check
          %p143 = pneg %p34
        $region22: #{ghost_module_forward.2} parent=19 // pred_check_branch
          %145 = sbr.rel (%p143) target = $region24
        $region23: #{ghost_module_forward.2} parent=19 // pred_region
          %s146 = sand.u32 %s24, 1
          %s147 = scalar_lea.sflag [#allocation3], %s146
          %s148 = sand.u32 %s24, 1
          %s149 = smul.addr %s148, 4
          %s150 = scalar_lea.vmem [#allocation2], %s149
          %s152 = ssub.s32 64, 64
          %153 = vsyncadd %s147, %s152
          %s154 = smul.addr %s14, 64
          %s155 = scalar_lea.hbm %s0, %s154
          %s157 = sshll.u32 %s150, 4
          %s158 = int_to_ptr.vmem [resolvable:$true] %s157
          %160 = dma.hbm_to_vmem [thread:$0]  %s155, 64, %s158, %s147
        $region24: #{ghost_module_forward.2} parent=19 // pred_fallthru
          _
      $region20: #{ghost_module_forward.2} parent=5 // pred_fallthru
        _
      %p161 = scmp.le.s32.totalorder 1, %s14
      %p162 = scmp.lt.s32.totalorder %s14, 3
      %p163 = pnand %p161, %p162
      %p164 = pneg %p163
      // Predicated region
      $region25: #{ghost_module_forward.2} parent=5 // pred_check
        _
      $region26: #{ghost_module_forward.2} parent=5 // pred_check_branch
        %166 = sbr.rel (%p163) target = $region28
      $region27: #{ghost_module_forward.2} parent=5 // pred_region
        %s167 = ssub.s32 %s14, 1
        %s168 = sand.u32 %s27, 1
        %s169 = scalar_lea.sflag [#allocation3], %s168
        %s170 = sand.u32 %s27, 1
        %s171 = smul.addr %s170, 4
        %s172 = scalar_lea.vmem [#allocation2], %s171
        // Predicated region
        $region29: #{ghost_module_forward.2} parent=27 // pred_check
          %p173 = pneg %p40
        $region30: #{ghost_module_forward.2} parent=27 // pred_check_branch
          %175 = sbr.rel (%p173) target = $region32
        $region31: #{ghost_module_forward.2} parent=27 // pred_region
          %176 = dma.done %s169, 64
        $region32: #{ghost_module_forward.2} parent=27 // pred_fallthru
          _
        // Predicated region
        $region33: #{ghost_module_forward.2} parent=27 // pred_check
          %p177 = pneg %p61
        $region34: #{ghost_module_forward.2} parent=27 // pred_check_branch
          %179 = sbr.rel (%p177) target = $region36
        $region35: #{ghost_module_forward.2} parent=27 // pred_region
          %180 = dma.done [#allocation5], 64
        $region36: #{ghost_module_forward.2} parent=27 // pred_fallthru
          _
        %s181 = sand.u32 %s27, 1
        %s182 = scalar_lea.sflag [#allocation3], %s181
        %s183 = sand.u32 %s27, 1
        %s184 = smul.addr %s183, 4
        %s185 = scalar_lea.vmem [#allocation2], %s184
        %p186 = pneg %p40
        %p187 = pneg %p37
        %p188 = pneg %p61
        %p189 = pneg %p58
        %p190 = pneg %p87
        %p191 = pneg %p84
        %p192 = scmp.lt.s32.totalorder %s19, 1
        %s193 = scalar_select %p192, %s19, 1
        %s194 = smul.addr %s193, 2
        %s195 = scalar_lea.vmem %s2, %s194
        %p196 = pneg %p113
        %p197 = pneg %p110
        %p198 = scmp.lt.s32.totalorder %s19, 1
        %s199 = scalar_select %p198, %s19, 1
        %s200 = smul.addr %s199, 4
        %s201 = scalar_lea.vmem %s3, %s200
        %p202 = scmp.lt.s32.totalorder %s19, 1
        %s203 = scalar_select %p202, %s19, 1
        %s204 = smul.addr %s203, 2
        %s205 = scalar_lea.vmem %s2, %s204
        %p206 = scmp.lt.s32.totalorder %s19, 1
        %s207 = scalar_select %p206, %s19, 1
        %s208 = smul.addr %s207, 4
        %s209 = scalar_lea.vmem %s3, %s208
        %v210 = vld [vmem:[%s172] sm:$0xf]
        %v211 = vld [vmem:[#allocation4] sm:$0xf]
        %vm212 = vcmask 31744
        %v214 = vsel %vm212, %v211, 0
        %vm216 = vcmask 1043456
        %v218 = vsel %vm216, %v210, 0
        %220 = vmatprep.subr.mxu0 0.0
        %221 = vmatpush1.msra.mxu0 0.0
        %222 = vmatprep.subr.mxu0 0.0
        %223 = vmatpush1.msra.mxu0 0.0
        %224 = vmatprep.subr.mxu0 0.0
        %225 = vmatpush1.msra.mxu0 0.0
        %226 = vmatprep.subr.mxu0 0.0
        %227 = vmatpush1.msra.mxu0 0.0
        %228 = vmatprep.subr.mxu0 0.0
        %229 = vmatpush1.msra.mxu0 0.0
        %230 = vmatprep.subr.mxu0 0.0
        %231 = vmatpush1.msra.mxu0 0.0
        %232 = vmatprep.subr.mxu0 0.0
        %233 = vmatpush1.msra.mxu0 0.0
        %234 = vmatprep.subr.mxu0 0.0
        %235 = vmatpush1.msra.mxu0 0.0
        %236 = vmatprep.subr.mxu0 0.0
        %237 = vmatpush1.msra.mxu0 0.0
        %238 = vmatprep.subr.mxu0 0.0
        %239 = vmatpush1.msra.mxu0 0.0
        %240 = vmatprep.subr.mxu0 0.0
        %241 = vmatpush1.msra.mxu0 0.0
        %242 = vmatprep.subr.mxu0 0.0
        %243 = vmatpush1.msra.mxu0 0.0
        %244 = vmatprep.subr.mxu0 0.0
        %245 = vmatpush1.msra.mxu0 0.0
        %246 = vmatprep.subr.mxu0 0.0
        %247 = vmatpush1.msra.mxu0 0.0
        %248 = vmatprep.subr.mxu0 0.0
        %249 = vmatpush1.msra.mxu0 0.0
        %250 = vmatprep.subr.mxu0 0.0
        %251 = vmatpush1.msra.mxu0 %v218
        %252 = vmatprep.subr.mxu0 0.0
        %253 = vmatpush2.msra.mxu0 0.0
        %254 = vmatprep.subr.mxu0 0.0
        %255 = vmatpush2.msra.mxu0 0.0
        %256 = vmatprep.subr.mxu0 0.0
        %257 = vmatpush2.msra.mxu0 0.0
        %258 = vmatprep.subr.mxu0 0.0
        %259 = vmatpush2.msra.mxu0 0.0
        %260 = vmatprep.subr.mxu0 0.0
        %261 = vmatpush2.msra.mxu0 0.0
        %262 = vmatprep.subr.mxu0 0.0
        %263 = vmatpush2.msra.mxu0 0.0
        %264 = vmatprep.subr.mxu0 0.0
        %265 = vmatpush2.msra.mxu0 0.0
        %266 = vmatprep.subr.mxu0 0.0
        %267 = vmatpush2.msra.mxu0 0.0
        %268 = vmatprep.subr.mxu0 0.0
        %269 = vmatpush2.msra.mxu0 0.0
        %270 = vmatprep.subr.mxu0 0.0
        %271 = vmatpush2.msra.mxu0 0.0
        %272 = vmatprep.subr.mxu0 0.0
        %273 = vmatpush2.msra.mxu0 0.0
        %274 = vmatprep.subr.mxu0 0.0
        %275 = vmatpush2.msra.mxu0 0.0
        %276 = vmatprep.subr.mxu0 0.0
        %277 = vmatpush2.msra.mxu0 0.0
        %278 = vmatprep.subr.mxu0 0.0
        %279 = vmatpush2.msra.mxu0 0.0
        %280 = vmatprep.subr.mxu0 0.0
        %281 = vmatpush2.msra.mxu0 0.0
        %282 = vmatprep.subr.mxu0 0.0
        %283 = vmatpush2.msra.mxu0 0.0
        %284 = vmatprep.mubr.f32.mxu0 0.0
        %285 = vmatmul.mubr.f32.gmra.mxu0 %v214
        %v286 = vpop.f32.mrf.mxu0
        %v287 = vadd.f32 0.0, %v286
        %v288 = vpop.f32.mrf.mxu0
        %289 = vdwg.mxu0
        %v290 = vpack.c.bf16 %v287, %v287
        %vm291 = vcmask 123904
        %292 = vst.msk [vmem:[%s205] sm:$0x3] %vm291, %v290
        %v293 = vunpack.c.l.bf16 %v290
        %v294 = vadd.f32 %v293, 0.0
        %v295 = vmul.f32 %v293, %v293
        %v296 = vadd.f32 %v295, 0.0
        %vm297 = vcmask 125952
        %v298 = vsel %vm297, %v294, 0.0
        %299 = vadd.xlane.f32.xlu0 %v298
        %v300 = vpop.xlane.xlu0 %299
        %v301 = vsel %vm297, %v296, 0.0
        %302 = vadd.xlane.f32.xlu0 %v301
        %v303 = vpop.xlane.xlu0 %302
        %vm304 = vcmask 7168
        %v305 = vsel %vm304, %v300, %v303
        %vm306 = vcmask 11264
        %307 = vst.msk [vmem:[%s209] sm:$0xf] %vm306, %v305
        %p308 = scmp.lt.s32.totalorder %s19, 1
        %s309 = scalar_select %p308, %s19, 1
        %s310 = smul.addr %s309, 2
        %s311 = scalar_lea.vmem %s2, %s310
        %p312 = scmp.lt.s32.totalorder %s19, 1
        %s313 = scalar_select %p312, %s19, 1
        %s314 = smul.addr %s313, 4
        %s315 = scalar_lea.vmem %s3, %s314
        // Predicated region
        $region37: #{ghost_module_forward.2} parent=27 // pred_check
          %p316 = pneg %p84
        $region38: #{ghost_module_forward.2} parent=27 // pred_check_branch
          %318 = sbr.rel (%p316) target = $region40
        $region39: #{ghost_module_forward.2} parent=27 // pred_region
          _
        $region40: #{ghost_module_forward.2} parent=27 // pred_fallthru
          _
        // Predicated region
        $region41: #{ghost_module_forward.2} parent=27 // pred_check
          %p319 = pneg %p110
        $region42: #{ghost_module_forward.2} parent=27 // pred_check_branch
          %321 = sbr.rel (%p319) target = $region44
        $region43: #{ghost_module_forward.2} parent=27 // pred_region
          _
        $region44: #{ghost_module_forward.2} parent=27 // pred_fallthru
          _
      $region28: #{ghost_module_forward.2} parent=5 // pred_fallthru
        _
      %p322 = scmp.le.s32.totalorder 2, %s14
      // Predicated region
      $region45: #{ghost_module_forward.2} parent=5 // pred_check
        %p323 = pneg %p322
      $region46: #{ghost_module_forward.2} parent=5 // pred_check_branch
        %325 = sbr.rel (%p323) target = $region48
      $region47: #{ghost_module_forward.2} parent=5 // pred_region
        %s326 = ssub.s32 %s14, 2
        // Predicated region
        $region49: #{ghost_module_forward.2} parent=47 // pred_check
          %p327 = pneg %p90
        $region50: #{ghost_module_forward.2} parent=47 // pred_check_branch
          %329 = sbr.rel (%p327) target = $region52
        $region51: #{ghost_module_forward.2} parent=47 // pred_region
          %p330 = scmp.lt.s32.totalorder %s20, 1
          %s331 = scalar_select %p330, %s20, 1
          %s332 = smul.addr %s331, 2
          %s333 = scalar_lea.vmem %s2, %s332
        $region52: #{ghost_module_forward.2} parent=47 // pred_fallthru
          _
        // Predicated region
        $region53: #{ghost_module_forward.2} parent=47 // pred_check
          %p334 = pneg %p116
        $region54: #{ghost_module_forward.2} parent=47 // pred_check_branch
          %336 = sbr.rel (%p334) target = $region56
        $region55: #{ghost_module_forward.2} parent=47 // pred_region
          %p337 = scmp.lt.s32.totalorder %s20, 1
          %s338 = scalar_select %p337, %s20, 1
          %s339 = smul.addr %s338, 4
          %s340 = scalar_lea.vmem %s3, %s339
        $region56: #{ghost_module_forward.2} parent=47 // pred_fallthru
          _
      $region48: #{ghost_module_forward.2} parent=5 // pred_fallthru
        _
    $region6: #{ghost_module_forward.2} parent=1 // loop_footer
      %s18 = sadd.s32 1, %s14
    $region7: #{ghost_module_forward.2} parent=1 // loop_footer_branch
      %13 = sbr.rel target = $region3
    $region8: #{ghost_module_forward.2} parent=1 // loop_exit
      _
    %341 = vsyncpa [#allocation3], 1
    %s342 = scalar_lea.sflag [#allocation3], 1
    %343 = vsyncpa %s342, 1
    %344 = vsyncpa [#allocation5], 1

</llo_original>
